<compile_context>
chip_gen: v7x
topology: tpu7x:2x2x1
jax: 0.10.0
libtpu: 0.0.40
codegen_flags: <defaults>
</compile_context>

<pallas_src>
import jax
import jax.numpy as jnp
from jax.experimental import pallas as pl
from jax.experimental.pallas import tpu as pltpu


def _make_kernel(*, ignore_label, real_label, hw, tile_hw, has_weight):
    ragged = (hw % tile_hw) != 0  # trace-time constant

    def kernel(*refs):
        if has_weight:
            x_ref, t_ref, w_ref, sum_ref, den_ref, acc_num, acc_den = refs
        else:
            x_ref, t_ref, sum_ref, den_ref, acc_num, acc_den = refs
            w_ref = None

        j = pl.program_id(1)

        @pl.when(j == 0)
        def _():
            acc_num[...] = jnp.zeros_like(acc_num)
            acc_den[...] = jnp.zeros_like(acc_den)

        x = x_ref[...].astype(jnp.float32)        # (C, TILE_HW) logits
        t = t_ref[...]                            # (1, TILE_HW) int32 labels

        # target_mask = (t >= 0) & (t != ignore_label) & (t != real_label)
        valid = (t >= 0) & (t != ignore_label) & (t != real_label)
        if ragged:
            # last tile may read past HW: mask out-of-range lanes and zero the
            # garbage logits so exp/log stay finite.
            pix = jax.lax.broadcasted_iota(jnp.int32, (1, tile_hw), 1) + j * tile_hw
            in_range = pix < hw
            valid = valid & in_range
            x = jnp.where(in_range, x, 0.0)
        vf = valid.astype(jnp.float32)            # (1, TILE_HW)

        # numerically stable log-softmax denominator over the class (sublane) axis
        m = jnp.max(x, axis=0, keepdims=True)                               # (1, TILE_HW)
        lse = m + jnp.log(jnp.sum(jnp.exp(x - m), axis=0, keepdims=True))   # (1, TILE_HW)

        # gather logit[target] (and weight[target]) via one-hot select
        cls = jax.lax.broadcasted_iota(jnp.int32, x.shape, 0)               # (C, TILE_HW)
        sel = cls == t                                                      # broadcast over sublanes
        logit_t = jnp.sum(jnp.where(sel, x, 0.0), axis=0, keepdims=True)    # (1, TILE_HW)

        if has_weight:
            w = w_ref[...].astype(jnp.float32)                              # (C, 1)
            w_t = jnp.sum(jnp.where(sel, w, 0.0), axis=0, keepdims=True)    # (1, TILE_HW)
            acc_num[...] = acc_num[...] + (lse - logit_t) * w_t * vf
            acc_den[...] = acc_den[...] + w_t * vf
        else:
            acc_num[...] = acc_num[...] + (lse - logit_t) * vf
            acc_den[...] = acc_den[...] + vf

        @pl.when(j == pl.num_programs(1) - 1)
        def _():
            sum_ref[...] = jnp.sum(acc_num[...], axis=-1, keepdims=True)
            den_ref[...] = jnp.sum(acc_den[...], axis=-1, keepdims=True)

    return kernel


def cross_entropy_2d(predict, target, weight=None, *, size_average=True,
                     ignore_label=255, real_label=100,
                     max_tile_hw=8192, max_block_bytes=8 << 20):
    """predict: (n, c, h, w) float (any dtype); target: (n, h, w) int.

    Returns a scalar loss matching the PyTorch CrossEntropy2d forward pass.
    """
    n, c, h, w = predict.shape
    assert target.shape == (n, h, w)
    hw = h * w

    # zero-copy views: (n, c, hw) logits in native dtype, (n, 1, hw) int32 labels
    x = predict.reshape(n, c, hw)
    t = target.reshape(n, 1, hw).astype(jnp.int32)

    # pixel tile: as large as the per-buffer VMEM budget allows, multiple of 128
    itemsize = jnp.dtype(x.dtype).itemsize
    tile_hw = (max_block_bytes // (c * itemsize)) // 128 * 128
    tile_hw = max(128, min(max_tile_hw, tile_hw))
    if hw <= tile_hw:
        tile_hw = hw              # whole spatial extent in one block
    num_j = pl.cdiv(hw, tile_hw)

    has_weight = weight is not None
    kernel = _make_kernel(ignore_label=ignore_label, real_label=real_label,
                          hw=hw, tile_hw=tile_hw, has_weight=has_weight)

    in_specs = [
        pl.BlockSpec((None, c, tile_hw), lambda b, j: (b, 0, j)),   # logits
        pl.BlockSpec((None, 1, tile_hw), lambda b, j: (b, 0, j)),   # labels
    ]
    args = [x, t]
    if has_weight:
        w_col = jnp.asarray(weight, jnp.float32).reshape(c, 1)
        in_specs.append(pl.BlockSpec((c, 1), lambda b, j: (0, 0)))  # class weights
        args.append(w_col)

    loss_sum, loss_den = pl.pallas_call(
        kernel,
        out_shape=(jax.ShapeDtypeStruct((n, 1, 1), jnp.float32),
                   jax.ShapeDtypeStruct((n, 1, 1), jnp.float32)),
        grid_spec=pltpu.PrefetchScalarGridSpec(
            num_scalar_prefetch=0,
            grid=(n, num_j),
            in_specs=in_specs,
            out_specs=[pl.BlockSpec((None, 1, 1), lambda b, j: (b, 0, 0)),
                       pl.BlockSpec((None, 1, 1), lambda b, j: (b, 0, 0))],
            scratch_shapes=[pltpu.VMEM((1, tile_hw), jnp.float32),
                            pltpu.VMEM((1, tile_hw), jnp.float32)],
        ),
        compiler_params=pltpu.CompilerParams(
            dimension_semantics=("parallel", "arbitrary")),
    )(*args)

    total = jnp.sum(loss_sum)
    if size_average:
        return total / jnp.sum(loss_den)
    return total


def _reference(predict, target, weight=None, ignore_label=255, real_label=100):
    """Pure-JAX reference mirroring F.cross_entropy(size_average=True)."""
    n, c, h, w = predict.shape
    x = jnp.transpose(predict, (0, 2, 3, 1)).reshape(-1, c).astype(jnp.float32)
    t = target.reshape(-1).astype(jnp.int32)
    valid = (t >= 0) & (t != ignore_label) & (t != real_label)
    logp = jax.nn.log_softmax(x, axis=-1)
    tc = jnp.clip(t, 0, c - 1)
    nll = -jnp.take_along_axis(logp, tc[:, None], axis=-1)[:, 0]
    wvec = jnp.ones((c,), jnp.float32) if weight is None else jnp.asarray(weight, jnp.float32)
    w_t = wvec[tc]
    num = jnp.sum(nll * w_t * valid)
    den = jnp.sum(w_t * valid)
    return num / den


if __name__ == "__main__":
    key = jax.random.PRNGKey(0)
    k1, k2, k3, k4 = jax.random.split(key, 4)

    n, c, h, w = 2, 4, 16, 16
    predict = jax.random.normal(k1, (n, c, h, w), jnp.float32)
    # labels in [0, c); sprinkle in ignore_label (255) and real_label (100)
    target = jax.random.randint(k2, (n, h, w), 0, c).astype(jnp.int32)
    drop = jax.random.uniform(k3, (n, h, w))
    target = jnp.where(drop < 0.10, 255, target)
    target = jnp.where((drop >= 0.10) & (drop < 0.15), 100, target)

    # unweighted path (weight=None, size_average=True)
    loss = jax.block_until_ready(cross_entropy_2d(predict, target))
    ref = jax.block_until_ready(_reference(predict, target))
    assert jnp.allclose(loss, ref, atol=1e-5, rtol=1e-5), (loss, ref)

    # weighted path
    wt = jax.random.uniform(k4, (c,), jnp.float32, 0.5, 2.0)
    loss_w = jax.block_until_ready(cross_entropy_2d(predict, target, wt))
    ref_w = jax.block_until_ready(_reference(predict, target, wt))
    assert jnp.allclose(loss_w, ref_w, atol=1e-5, rtol=1e-5), (loss_w, ref_w)

    print("KERNEL_OK")
</pallas_src>

<mosaic_0001>
module attributes {stable_mosaic.version = 11 : i64} {
  func.func @kernel(%arg0: i32, %arg1: i32, %arg2: memref<1x4x256xf32, #tpu.memory_space<vmem>>, %arg3: memref<1x1x256xi32, #tpu.memory_space<vmem>>, %arg4: memref<1x1x1xf32, #tpu.memory_space<vmem>>, %arg5: memref<1x1x1xf32, #tpu.memory_space<vmem>>, %arg6: memref<1x256xf32, #tpu.memory_space<vmem>>, %arg7: memref<1x256xf32, #tpu.memory_space<vmem>>) attributes {dimension_semantics = [#tpu.dimension_semantics<parallel>, #tpu.dimension_semantics<arbitrary>], iteration_bounds = array<i64: 2, 1>, scalar_prefetch = 0 : i64, scratch_operands = 2 : i64, tpu.core_type = #tpu.core_type<tc>, window_params = [{transform_indices = @transform_0, window_bounds = array<i64: 1, 4, 256>}, {transform_indices = @transform_1, window_bounds = array<i64: 1, 1, 256>}, {transform_indices = @transform_2, window_bounds = array<i64: 1, 1, 1>}, {transform_indices = @transform_3, window_bounds = array<i64: 1, 1, 1>}]} {
    %c0_i32 = arith.constant 0 : i32
    %0 = arith.cmpi eq, %arg1, %c0_i32 : i32
    %1 = arith.extui %0 : i1 to i32
    %c0_i32_0 = arith.constant 0 : i32
    %2 = arith.cmpi ne, %1, %c0_i32_0 : i32
    scf.if %2 {
      %cst_20 = arith.constant 0.000000e+00 : f32
      %44 = vector.broadcast %cst_20 : f32 to vector<1x256xf32>
      %c0_21 = arith.constant 0 : index
      %c0_22 = arith.constant 0 : index
      %45 = vector.load %arg6[%c0_21, %c0_22] : memref<1x256xf32, #tpu.memory_space<vmem>>, vector<1x256xf32>
      tpu.vector_store %arg6[%c0_21, %c0_22], %44 {strides = array<i32>} : memref<1x256xf32, #tpu.memory_space<vmem>>, vector<1x256xf32>,
      %cst_23 = arith.constant 0.000000e+00 : f32
      %46 = vector.broadcast %cst_23 : f32 to vector<1x256xf32>
      %c0_24 = arith.constant 0 : index
      %c0_25 = arith.constant 0 : index
      %47 = vector.load %arg7[%c0_24, %c0_25] : memref<1x256xf32, #tpu.memory_space<vmem>>, vector<1x256xf32>
      tpu.vector_store %arg7[%c0_24, %c0_25], %46 {strides = array<i32>} : memref<1x256xf32, #tpu.memory_space<vmem>>, vector<1x256xf32>,
    } else {
    }
    %c0 = arith.constant 0 : index
    %c0_1 = arith.constant 0 : index
    %c0_2 = arith.constant 0 : index
    %3 = vector.load %arg2[%c0, %c0_1, %c0_2] : memref<1x4x256xf32, #tpu.memory_space<vmem>>, vector<1x4x256xf32>
    %4 = vector.shape_cast %3 : vector<1x4x256xf32> to vector<4x256xf32>
    %c0_3 = arith.constant 0 : index
    %c0_4 = arith.constant 0 : index
    %c0_5 = arith.constant 0 : index
    %5 = vector.load %arg3[%c0_3, %c0_4, %c0_5] : memref<1x1x256xi32, #tpu.memory_space<vmem>>, vector<1x1x256xi32>
    %6 = vector.shape_cast %5 : vector<1x1x256xi32> to vector<1x256xi32>
    %c0_i32_6 = arith.constant 0 : i32
    %7 = vector.broadcast %c0_i32_6 : i32 to vector<1x256xi32>
    %8 = arith.cmpi sge, %6, %7 : vector<1x256xi32>
    %c255_i32 = arith.constant 255 : i32
    %9 = vector.broadcast %c255_i32 : i32 to vector<1x256xi32>
    %10 = arith.cmpi ne, %6, %9 : vector<1x256xi32>
    %11 = arith.andi %8, %10 : vector<1x256xi1>
    %c100_i32 = arith.constant 100 : i32
    %12 = vector.broadcast %c100_i32 : i32 to vector<1x256xi32>
    %13 = arith.cmpi ne, %6, %12 : vector<1x256xi32>
    %14 = arith.andi %11, %13 : vector<1x256xi1>
    %15 = arith.extui %14 : vector<1x256xi1> to vector<1x256xi32>
    %16 = arith.sitofp %15 : vector<1x256xi32> to vector<1x256xf32>
    %cst = arith.constant dense<0xFF800000> : vector<256xf32>
    %17 = vector.multi_reduction <maximumf>, %4, %cst [0] : vector<4x256xf32> to vector<256xf32>
    %18 = vector.shape_cast %17 : vector<256xf32> to vector<1x256xf32>
    %19 = vector.broadcast %18 : vector<1x256xf32> to vector<4x256xf32>
    %20 = arith.subf %4, %19 : vector<4x256xf32>
    %21 = math.exp %20 : vector<4x256xf32>
    %cst_7 = arith.constant dense<0.000000e+00> : vector<256xf32>
    %22 = vector.multi_reduction <add>, %21, %cst_7 [0] : vector<4x256xf32> to vector<256xf32>
    %23 = vector.shape_cast %22 : vector<256xf32> to vector<1x256xf32>
    %24 = math.log %23 : vector<1x256xf32>
    %25 = arith.addf %18, %24 : vector<1x256xf32>
    %26 = tpu.iota {dimensions = array<i32: 0>} : vector<4x256xi32>
    %27 = vector.broadcast %6 : vector<1x256xi32> to vector<4x256xi32>
    %28 = arith.cmpi eq, %26, %27 : vector<4x256xi32>
    %cst_8 = arith.constant 0.000000e+00 : f32
    %29 = vector.broadcast %cst_8 : f32 to vector<4x256xf32>
    %30 = arith.select %28, %4, %29 : vector<4x256xi1>, vector<4x256xf32>
    %cst_9 = arith.constant dense<0.000000e+00> : vector<256xf32>
    %31 = vector.multi_reduction <add>, %30, %cst_9 [0] : vector<4x256xf32> to vector<256xf32>
    %32 = vector.shape_cast %31 : vector<256xf32> to vector<1x256xf32>
    %c0_10 = arith.constant 0 : index
    %c0_11 = arith.constant 0 : index
    %33 = vector.load %arg6[%c0_10, %c0_11] : memref<1x256xf32, #tpu.memory_space<vmem>>, vector<1x256xf32>
    %34 = arith.subf %25, %32 : vector<1x256xf32>
    %35 = arith.mulf %34, %16 : vector<1x256xf32>
    %36 = arith.addf %33, %35 : vector<1x256xf32>
    %c0_12 = arith.constant 0 : index
    %c0_13 = arith.constant 0 : index
    %37 = vector.load %arg6[%c0_12, %c0_13] : memref<1x256xf32, #tpu.memory_space<vmem>>, vector<1x256xf32>
    tpu.vector_store %arg6[%c0_12, %c0_13], %36 {strides = array<i32>} : memref<1x256xf32, #tpu.memory_space<vmem>>, vector<1x256xf32>,
    %c0_14 = arith.constant 0 : index
    %c0_15 = arith.constant 0 : index
    %38 = vector.load %arg7[%c0_14, %c0_15] : memref<1x256xf32, #tpu.memory_space<vmem>>, vector<1x256xf32>
    %39 = arith.addf %38, %16 : vector<1x256xf32>
    %c0_16 = arith.constant 0 : index
    %c0_17 = arith.constant 0 : index
    %40 = vector.load %arg7[%c0_16, %c0_17] : memref<1x256xf32, #tpu.memory_space<vmem>>, vector<1x256xf32>
    tpu.vector_store %arg7[%c0_16, %c0_17], %39 {strides = array<i32>} : memref<1x256xf32, #tpu.memory_space<vmem>>, vector<1x256xf32>,
    %c0_i32_18 = arith.constant 0 : i32
    %41 = arith.cmpi eq, %arg1, %c0_i32_18 : i32
    %42 = arith.extui %41 : i1 to i32
    %c0_i32_19 = arith.constant 0 : i32
    %43 = arith.cmpi ne, %42, %c0_i32_19 : i32
    scf.if %43 {
      %c0_20 = arith.constant 0 : index
      %c0_21 = arith.constant 0 : index
      %44 = vector.load %arg6[%c0_20, %c0_21] : memref<1x256xf32, #tpu.memory_space<vmem>>, vector<1x256xf32>
      %cst_22 = arith.constant dense<0.000000e+00> : vector<1xf32>
      %45 = vector.multi_reduction <add>, %44, %cst_22 [1] : vector<1x256xf32> to vector<1xf32>
      %46 = vector.shape_cast %45 : vector<1xf32> to vector<1x1xf32>
      %c0_23 = arith.constant 0 : index
      %c0_24 = arith.constant 0 : index
      %c0_25 = arith.constant 0 : index
      %47 = vector.load %arg4[%c0_23, %c0_24, %c0_25] : memref<1x1x1xf32, #tpu.memory_space<vmem>>, vector<1x1x1xf32>
      %48 = vector.shape_cast %47 : vector<1x1x1xf32> to vector<1x1xf32>
      %49 = vector.shape_cast %46 : vector<1x1xf32> to vector<1x1x1xf32>
      tpu.vector_store %arg4[%c0_23, %c0_24, %c0_25], %49 {strides = array<i32>} : memref<1x1x1xf32, #tpu.memory_space<vmem>>, vector<1x1x1xf32>,
      %c0_26 = arith.constant 0 : index
      %c0_27 = arith.constant 0 : index
      %50 = vector.load %arg7[%c0_26, %c0_27] : memref<1x256xf32, #tpu.memory_space<vmem>>, vector<1x256xf32>
      %cst_28 = arith.constant dense<0.000000e+00> : vector<1xf32>
      %51 = vector.multi_reduction <add>, %50, %cst_28 [1] : vector<1x256xf32> to vector<1xf32>
      %52 = vector.shape_cast %51 : vector<1xf32> to vector<1x1xf32>
      %c0_29 = arith.constant 0 : index
      %c0_30 = arith.constant 0 : index
      %c0_31 = arith.constant 0 : index
      %53 = vector.load %arg5[%c0_29, %c0_30, %c0_31] : memref<1x1x1xf32, #tpu.memory_space<vmem>>, vector<1x1x1xf32>
      %54 = vector.shape_cast %53 : vector<1x1x1xf32> to vector<1x1xf32>
      %55 = vector.shape_cast %52 : vector<1x1xf32> to vector<1x1x1xf32>
      tpu.vector_store %arg5[%c0_29, %c0_30, %c0_31], %55 {strides = array<i32>} : memref<1x1x1xf32, #tpu.memory_space<vmem>>, vector<1x1x1xf32>,
    } else {
    }
    return
  }
  func.func @transform_0(%arg0: i32, %arg1: i32) -> (i32, i32, i32) {
    %c0_i32 = arith.constant 0 : i32
    %c0_i32_0 = arith.constant 0 : i32
    return %arg0, %c0_i32, %arg1 : i32, i32, i32
  }
  func.func @transform_1(%arg0: i32, %arg1: i32) -> (i32, i32, i32) {
    %c0_i32 = arith.constant 0 : i32
    %c0_i32_0 = arith.constant 0 : i32
    return %arg0, %c0_i32, %arg1 : i32, i32, i32
  }
  func.func @transform_2(%arg0: i32, %arg1: i32) -> (i32, i32, i32) {
    %c0_i32 = arith.constant 0 : i32
    %c0_i32_0 = arith.constant 0 : i32
    %c0_i32_1 = arith.constant 0 : i32
    return %arg0, %c0_i32, %c0_i32_0 : i32, i32, i32
  }
  func.func @transform_3(%arg0: i32, %arg1: i32) -> (i32, i32, i32) {
    %c0_i32 = arith.constant 0 : i32
    %c0_i32_0 = arith.constant 0 : i32
    %c0_i32_1 = arith.constant 0 : i32
    return %arg0, %c0_i32, %c0_i32_0 : i32, i32, i32
  }
}

</mosaic_0001>

<llo_original>
// kernel: tpu_custom_call.1
$region0: #{tpu_custom_call.1}
  #allocation0 [shape = 'u32[]', space=smem, size = 0x4, offset = 0x4, fixed_abs, tag = 'smem constant byte address 0x4 - core index']
  #allocation1 [shape = 'u32[144,128]{1,0:T(1,128)}', space=vmem, size = 0x12000, scoped, tag = 'internal scratch']
  #allocation2 [shape = 'f32[1,256]{1,0:T(1,128)}', space=vmem, size = 0x400, scoped, tag = 'scratch operand']
  #allocation3 [shape = 'f32[1,256]{1,0:T(1,128)}', space=vmem, size = 0x400, scoped, tag = 'scratch operand']
  %s0 = inlined_call_operand.hbm [shape: f32[2,4,256], index: 0, kind: input, shape index: {}]
  %s1 = inlined_call_operand.hbm [shape: s32[2,1,256], index: 1, kind: input, shape index: {}]
  %s2 = inlined_call_operand.vmem [shape: f32[2,1,1], index: 2, kind: output, shape index: {0}]
  %s3 = inlined_call_operand.vmem [shape: f32[2,1,1], index: 3, kind: output, shape index: {1}]
  %4 = xla_tuple %s2, %s3
  %s5 = sld [smem:[#allocation0]]
  $region65: #{tpu_custom_call.1} parent=0
    _
  %s7 = ssub.s32 1, %s5
  %s8 = scalar_select 0, %s7, %s5
  $region1: #{tpu_custom_call.1} parent=0
    #allocation4 [shape = 'u8[8192]{0}', space=vmem, size = 0x2000, scoped, tag = 'input window, operand 0']
    #allocation5 [shape = 's32[2]{0}', space=sflag, size = 0x8, scoped, tag = 'scoped memory for tpu_custom_call.1']
    #allocation6 [shape = 'u8[2048]{0}', space=vmem, size = 0x800, scoped, tag = 'input window, operand 1']
    #allocation7 [shape = 's32[2]{0}', space=sflag, size = 0x8, scoped, tag = 'scoped memory for tpu_custom_call.1']
    %9 = vsyncpa [#allocation5], 0
    %s10 = scalar_lea.sflag [#allocation5], 1
    %11 = vsyncpa %s10, 0
    %12 = vsyncpa [#allocation7], 0
    %s13 = scalar_lea.sflag [#allocation7], 1
    %14 = vsyncpa %s13, 0
    loop: start=0, step=1, limit=4
    $region2: #{tpu_custom_call.1} parent=1 // loop_pre_header
      _
    $region3: #{tpu_custom_call.1} parent=1 // loop_header
      %s16 = sphi 0, %s20
      %p17 = scmp.ge.s32.totalorder %s16, 4
      %s23 = sphi 0, %s35
      %s24 = sphi 0, %s31
      %s25 = sphi 0, %s23
      %s26 = sphi 0, %s24
      %s27 = sphi 0, %s25
      %s28 = sphi 0, %s26
      %s40 = sphi 0, %s42
      %s43 = sphi 0, %s40
      %s44 = sphi 0, %s43
      %s60 = sphi 0, %s44
      %s68 = sphi 0, %s70
      %s71 = sphi 0, %s68
      %s72 = sphi 0, %s71
      %s88 = sphi 0, %s72
      %s94 = sphi 0, %s96
      %s97 = sphi 0, %s94
      %s98 = sphi 0, %s97
      %s114 = sphi 0, %s98
      %s120 = sphi 0, %s122
      %s123 = sphi 0, %s120
      %s124 = sphi 0, %s123
      %s140 = sphi 0, %s124
    $region4: #{tpu_custom_call.1} parent=1 // loop_header_branch
      %19 = sbr.rel (%p17) target = $region8
    $region5: #{tpu_custom_call.1} parent=1 // loop_body
      %s21 = ssub.s32 %s16, 1
      %s22 = ssub.s32 %s16, 2
      %s29 = sadd.s32 1, %s24
      %p30 = scmp.ge.s32.totalorder %s29, 1
      %s31 = scalar_select %p30, 0, %s29
      %s32 = sadd.s32 1, %s23
      %s33 = scalar_select %p30, %s32, %s23
      %p34 = scmp.ge.s32.totalorder %s33, 2
      %s35 = scalar_select %p34, 0, %s33
      %s36 = ssub.s32 %s23, %s35
      %s37 = ssub.s32 %s24, %s31
      %s38 = sor.u32 %s36, %s37
      %p39 = scmp.eq.s32.totalorder %s38, 0
      %s41 = sadd.s32 %s40, 1
      %s42 = scalar_select %p39, %s40, %s41
      %p45 = pneg %p39
      %p46 = scmp.eq.s32.totalorder %s16, 1
      %p47 = por %p45, %p46
      %p48 = scmp.ne.s32.totalorder %s40, %s43
      %p49 = scmp.eq.s32.totalorder %s16, 0
      %p50 = por %p48, %p49
      %p51 = scmp.ne.s32.totalorder %s40, %s43
      %p52 = scmp.eq.s32.totalorder %s21, 1
      %p53 = por %p51, %p52
      %p54 = scmp.ne.s32.totalorder %s43, %s44
      %p55 = scmp.eq.s32.totalorder %s21, 0
      %p56 = por %p54, %p55
      %p57 = scmp.ne.s32.totalorder %s43, %s44
      %p58 = scmp.eq.s32.totalorder %s22, 1
      %p59 = por %p57, %p58
      %p61 = scmp.ne.s32.totalorder %s44, %s60
      %p62 = scmp.eq.s32.totalorder %s22, 0
      %p63 = por %p61, %p62
      %s64 = ssub.s32 %s23, %s35
      %s65 = ssub.s32 %s24, %s31
      %s66 = sor.u32 %s64, %s65
      %p67 = scmp.eq.s32.totalorder %s66, 0
      %s69 = sadd.s32 %s68, 1
      %s70 = scalar_select %p67, %s68, %s69
      %p73 = pneg %p67
      %p74 = scmp.eq.s32.totalorder %s16, 1
      %p75 = por %p73, %p74
      %p76 = scmp.ne.s32.totalorder %s68, %s71
      %p77 = scmp.eq.s32.totalorder %s16, 0
      %p78 = por %p76, %p77
      %p79 = scmp.ne.s32.totalorder %s68, %s71
      %p80 = scmp.eq.s32.totalorder %s21, 1
      %p81 = por %p79, %p80
      %p82 = scmp.ne.s32.totalorder %s71, %s72
      %p83 = scmp.eq.s32.totalorder %s21, 0
      %p84 = por %p82, %p83
      %p85 = scmp.ne.s32.totalorder %s71, %s72
      %p86 = scmp.eq.s32.totalorder %s22, 1
      %p87 = por %p85, %p86
      %p89 = scmp.ne.s32.totalorder %s72, %s88
      %p90 = scmp.eq.s32.totalorder %s22, 0
      %p91 = por %p89, %p90
      %s92 = ssub.s32 %s23, %s35
      %p93 = scmp.eq.s32.totalorder %s92, 0
      %s95 = sadd.s32 %s94, 1
      %s96 = scalar_select %p93, %s94, %s95
      %p99 = pneg %p93
      %p100 = scmp.eq.s32.totalorder %s16, 1
      %p101 = por %p99, %p100
      %p102 = scmp.ne.s32.totalorder %s94, %s97
      %p103 = scmp.eq.s32.totalorder %s16, 0
      %p104 = por %p102, %p103
      %p105 = scmp.ne.s32.totalorder %s94, %s97
      %p106 = scmp.eq.s32.totalorder %s21, 1
      %p107 = por %p105, %p106
      %p108 = scmp.ne.s32.totalorder %s97, %s98
      %p109 = scmp.eq.s32.totalorder %s21, 0
      %p110 = por %p108, %p109
      %p111 = scmp.ne.s32.totalorder %s97, %s98
      %p112 = scmp.eq.s32.totalorder %s22, 1
      %p113 = por %p111, %p112
      %p115 = scmp.ne.s32.totalorder %s98, %s114
      %p116 = scmp.eq.s32.totalorder %s22, 0
      %p117 = por %p115, %p116
      %s118 = ssub.s32 %s23, %s35
      %p119 = scmp.eq.s32.totalorder %s118, 0
      %s121 = sadd.s32 %s120, 1
      %s122 = scalar_select %p119, %s120, %s121
      %p125 = pneg %p119
      %p126 = scmp.eq.s32.totalorder %s16, 1
      %p127 = por %p125, %p126
      %p128 = scmp.ne.s32.totalorder %s120, %s123
      %p129 = scmp.eq.s32.totalorder %s16, 0
      %p130 = por %p128, %p129
      %p131 = scmp.ne.s32.totalorder %s120, %s123
      %p132 = scmp.eq.s32.totalorder %s21, 1
      %p133 = por %p131, %p132
      %p134 = scmp.ne.s32.totalorder %s123, %s124
      %p135 = scmp.eq.s32.totalorder %s21, 0
      %p136 = por %p134, %p135
      %p137 = scmp.ne.s32.totalorder %s123, %s124
      %p138 = scmp.eq.s32.totalorder %s22, 1
      %p139 = por %p137, %p138
      %p141 = scmp.ne.s32.totalorder %s124, %s140
      %p142 = scmp.eq.s32.totalorder %s22, 0
      %p143 = por %p141, %p142
      %p144 = scmp.le.s32.totalorder 1, %s16
      %p145 = scmp.lt.s32.totalorder %s16, 3
      %p146 = pnand %p144, %p145
      %p147 = pneg %p146
      // Predicated region
      $region9: #{tpu_custom_call.1} parent=5 // pred_check
        _
      $region10: #{tpu_custom_call.1} parent=5 // pred_check_branch
        %149 = sbr.rel (%p146) target = $region12
      $region11: #{tpu_custom_call.1} parent=5 // pred_region
        %s150 = ssub.s32 %s16, 1
      $region12: #{tpu_custom_call.1} parent=5 // pred_fallthru
        _
      %p151 = scmp.lt.s32.totalorder %s16, 2
      // Predicated region
      $region13: #{tpu_custom_call.1} parent=5 // pred_check
        %p152 = pneg %p151
      $region14: #{tpu_custom_call.1} parent=5 // pred_check_branch
        %154 = sbr.rel (%p152) target = $region16
      $region15: #{tpu_custom_call.1} parent=5 // pred_region
        // Predicated region
        $region17: #{tpu_custom_call.1} parent=15 // pred_check
          %p155 = pneg %p50
        $region18: #{tpu_custom_call.1} parent=15 // pred_check_branch
          %157 = sbr.rel (%p155) target = $region20
        $region19: #{tpu_custom_call.1} parent=15 // pred_region
          %s158 = sand.u32 %s40, 1
          %s159 = scalar_lea.sflag [#allocation5], %s158
          %s160 = sand.u32 %s40, 1
          %s161 = smul.addr %s160, 8
          %s162 = scalar_lea.vmem [#allocation4], %s161
          %s163 = smul.u32 2, %s24
          %s165 = ssub.s32 128, 128
          %166 = vsyncadd %s159, %s165
          %s167 = smul.addr %s23, 2
          %s168 = sadd.s32 %s163, %s167
          %s169 = smul.addr %s168, 64
          %s170 = scalar_lea.hbm %s0, %s169
          %s172 = sshll.u32 %s162, 4
          %s173 = int_to_ptr.vmem [resolvable:$true] %s172
          %175 = dma.hbm_to_vmem [thread:$0]  %s170, 128, %s173, %s159
        $region20: #{tpu_custom_call.1} parent=15 // pred_fallthru
          _
        // Predicated region
        $region21: #{tpu_custom_call.1} parent=15 // pred_check
          %p176 = pneg %p78
        $region22: #{tpu_custom_call.1} parent=15 // pred_check_branch
          %178 = sbr.rel (%p176) target = $region24
        $region23: #{tpu_custom_call.1} parent=15 // pred_region
          %s179 = sand.u32 %s68, 1
          %s180 = scalar_lea.sflag [#allocation7], %s179
          %s181 = sand.u32 %s68, 1
          %s182 = smul.addr %s181, 2
          %s183 = scalar_lea.vmem [#allocation6], %s182
          %s184 = smul.u32 2, %s24
          %s186 = ssub.s32 32, 32
          %187 = vsyncadd %s180, %s186
          %s188 = smul.addr %s23, 2
          %s189 = sadd.s32 %s184, %s188
          %s190 = smul.addr %s189, 16
          %s191 = scalar_lea.hbm %s1, %s190
          %s193 = sshll.u32 %s183, 4
          %s194 = int_to_ptr.vmem [resolvable:$true] %s193
          %196 = dma.hbm_to_vmem [thread:$0]  %s191, 32, %s194, %s180
        $region24: #{tpu_custom_call.1} parent=15 // pred_fallthru
          _
      $region16: #{tpu_custom_call.1} parent=5 // pred_fallthru
        _
      %p197 = scmp.le.s32.totalorder 1, %s16
      %p198 = scmp.lt.s32.totalorder %s16, 3
      %p199 = pnand %p197, %p198
      %p200 = pneg %p199
      // Predicated region
      $region25: #{tpu_custom_call.1} parent=5 // pred_check
        _
      $region26: #{tpu_custom_call.1} parent=5 // pred_check_branch
        %202 = sbr.rel (%p199) target = $region28
      $region27: #{tpu_custom_call.1} parent=5 // pred_region
        %s203 = ssub.s32 %s16, 1
        %s204 = sand.u32 %s43, 1
        %s205 = scalar_lea.sflag [#allocation5], %s204
        %s206 = sand.u32 %s43, 1
        %s207 = smul.addr %s206, 8
        %s208 = scalar_lea.vmem [#allocation4], %s207
        // Predicated region
        $region29: #{tpu_custom_call.1} parent=27 // pred_check
          %p209 = pneg %p56
        $region30: #{tpu_custom_call.1} parent=27 // pred_check_branch
          %211 = sbr.rel (%p209) target = $region32
        $region31: #{tpu_custom_call.1} parent=27 // pred_region
          %212 = dma.done %s205, 128
        $region32: #{tpu_custom_call.1} parent=27 // pred_fallthru
          _
        %s213 = sand.u32 %s71, 1
        %s214 = scalar_lea.sflag [#allocation7], %s213
        %s215 = sand.u32 %s71, 1
        %s216 = smul.addr %s215, 2
        %s217 = scalar_lea.vmem [#allocation6], %s216
        // Predicated region
        $region33: #{tpu_custom_call.1} parent=27 // pred_check
          %p218 = pneg %p84
        $region34: #{tpu_custom_call.1} parent=27 // pred_check_branch
          %220 = sbr.rel (%p218) target = $region36
        $region35: #{tpu_custom_call.1} parent=27 // pred_region
          %221 = dma.done %s214, 32
        $region36: #{tpu_custom_call.1} parent=27 // pred_fallthru
          _
        %s222 = sand.u32 %s43, 1
        %s223 = scalar_lea.sflag [#allocation5], %s222
        %s224 = sand.u32 %s43, 1
        %s225 = smul.addr %s224, 8
        %s226 = scalar_lea.vmem [#allocation4], %s225
        %p227 = pneg %p56
        %p228 = pneg %p53
        %s229 = sand.u32 %s71, 1
        %s230 = scalar_lea.sflag [#allocation7], %s229
        %s231 = sand.u32 %s71, 1
        %s232 = smul.addr %s231, 2
        %s233 = scalar_lea.vmem [#allocation6], %s232
        %p234 = pneg %p84
        %p235 = pneg %p81
        %p236 = pneg %p110
        %p237 = pneg %p107
        %p238 = scmp.lt.s32.totalorder %s25, 1
        %s239 = scalar_select %p238, %s25, 1
        %s240 = scalar_lea.vmem %s2, %s239
        %p241 = pneg %p136
        %p242 = pneg %p133
        %p243 = scmp.lt.s32.totalorder %s25, 1
        %s244 = scalar_select %p243, %s25, 1
        %s245 = scalar_lea.vmem %s3, %s244
        %s246 = smul.u32 2, %s26
        %s247 = smul.u32 2, %s26
        %p248 = scmp.lt.s32.totalorder %s25, 1
        %s249 = scalar_select %p248, %s25, 1
        %s250 = scalar_lea.vmem %s2, %s249
        %p251 = scmp.lt.s32.totalorder %s25, 1
        %s252 = scalar_select %p251, %s25, 1
        %s253 = scalar_lea.vmem %s3, %s252
        %p254 = scmp.eq.s32.totalorder %s26, 0
        // Predicated region
        $region37: #{tpu_custom_call.1} parent=27 // pred_check
          %p255 = pneg %p254
        $region38: #{tpu_custom_call.1} parent=27 // pred_check_branch
          %257 = sbr.rel (%p255) target = $region40
        $region39: #{tpu_custom_call.1} parent=27 // pred_region
          %v258 = vlaneseq
          %vm259 = vcmp.ge.s32.totalorder %v258, 0
          %vm260 = vcmp.lt.s32.totalorder %v258, 256
          %vm261 = vmand %vm259, %vm260
          %262 = vst.msk [vmem:[#allocation2] sm:$0x3] %vm261, 0.0
          %263 = vst.msk [vmem:[#allocation3] sm:$0x3] %vm261, 0.0
        $region40: #{tpu_custom_call.1} parent=27 // pred_fallthru
          _
        %v264 = vld [vmem:[%s208] sm:$0xff]
        %v265 = vld [vmem:[%s217] sm:$0x3]
        %vm266 = vcmp.ge.s32.totalorder %v265, 0
        %vm267 = vcmp.ne.s32.totalorder %v265, 255
        %vm268 = vmand %vm266, %vm267
        %vm269 = vcmp.ne.s32.totalorder %v265, 100
        %vm270 = vmand %vm268, %vm269
        %v271 = vsel %vm270, 1, 0
        %v272 = vcvt.s32.f32 %v271
        %v274 = vcombine.high %v264, %v264
        %vm276 = vcmask 1043456
        %v277 = vsel %vm276, %v264, -inf
        %v278 = vrot.slane %v277, 4
        %v279 = vmax.f32 %v277, %v278
        %v280 = vrot.slane %v279, 2
        %v281 = vmax.f32 %v279, %v280
        %v282 = vrot.slane %v281, 1
        %v283 = vmax.f32 %v281, %v282
        %v284 = vsel %vm276, %v274, -inf
        %v285 = vrot.slane %v284, 4
        %v286 = vmax.f32 %v284, %v285
        %v287 = vrot.slane %v286, 2
        %v288 = vmax.f32 %v286, %v287
        %v289 = vrot.slane %v288, 1
        %v290 = vmax.f32 %v288, %v289
        %v293 = vcombine.low %v283, %v290
        %v295 = vsub.f32 %v264, %v293
        %v296 = vmul.f32 %v295, 1.442695
        %v297 = vpow.pop %v296
        %v299 = vcombine.high %v297, %v297
        %v301 = vsel %vm276, %v297, 0.0
        %v302 = vrot.slane %v301, 4
        %v303 = vadd.f32 %v301, %v302
        %v304 = vrot.slane %v303, 2
        %v305 = vadd.f32 %v303, %v304
        %v306 = vrot.slane %v305, 1
        %v307 = vadd.f32 %v305, %v306
        %v308 = vsel %vm276, %v299, 0.0
        %v309 = vrot.slane %v308, 4
        %v310 = vadd.f32 %v308, %v309
        %v311 = vrot.slane %v310, 2
        %v312 = vadd.f32 %v310, %v311
        %v313 = vrot.slane %v312, 1
        %v314 = vadd.f32 %v312, %v313
        %v315 = vlog2.pop %v307
        %v316 = vmul.f32 %v315, 0.6931472
        %v317 = vlog2.pop %v314
        %v318 = vmul.f32 %v317, 0.6931472
        %v319 = vadd.f32 %v283, %v316
        %v320 = vadd.f32 %v290, %v318
        %v321 = vlaneseq
        %v322 = vshrl.u32 %v321, 7
        %v323 = vlaneseq
        %v324 = vshrl.u32 %v323, 7
        %v325 = vsub.s32 0, %v324
        %v326 = vrot.slane %v265, %v325
        %v327 = vlaneseq
        %v328 = vshrl.u32 %v327, 7
        %v329 = vsub.s32 1, %v328
        %v330 = vrot.slane %v265, %v329
        %vm331 = vcmp.eq.s32.totalorder %v322, %v326
        %vm332 = vcmp.eq.s32.totalorder %v322, %v330
        %v333 = vsel %vm331, %v264, 0.0
        %v334 = vsel %vm332, %v274, 0.0
        %v335 = vsel %vm276, %v333, 0.0
        %v336 = vrot.slane %v335, 4
        %v337 = vadd.f32 %v335, %v336
        %v338 = vrot.slane %v337, 2
        %v339 = vadd.f32 %v337, %v338
        %v340 = vrot.slane %v339, 1
        %v341 = vadd.f32 %v339, %v340
        %v342 = vsel %vm276, %v334, 0.0
        %v343 = vrot.slane %v342, 4
        %v344 = vadd.f32 %v342, %v343
        %v345 = vrot.slane %v344, 2
        %v346 = vadd.f32 %v344, %v345
        %v347 = vrot.slane %v346, 1
        %v348 = vadd.f32 %v346, %v347
        %v349 = vld [vmem:[#allocation2] sm:$0x3]
        %v350 = vsub.f32 %v319, %v341
        %v351 = vsub.f32 %v320, %v348
        %v353 = vlaneseq
        %v354 = vshrl.u32 %v353, 7
        %v355 = vsub.s32 0, %v354
        %v356 = vrot.slane %v272, %v355
        %v357 = vlaneseq
        %v358 = vshrl.u32 %v357, 7
        %v359 = vsub.s32 1, %v358
        %v360 = vrot.slane %v272, %v359
        %v363 = vmul.f32 %v350, %v356
        %v364 = vmul.f32 %v351, %v360
        %v367 = vcombine.low %v363, %v364
        %v369 = vunpack.c.l.s4 1966171168
        %v370 = vunpack.c.0.s8 %v369
        %v371 = vlaneseq
        %v372 = vshrl.u32 %v371, 7
        %v373 = vsub.s32 %v370, %v372
        %v374 = vrot.slane %v367, %v373
        %v376 = vunpack.c.l.s4 1966171168
        %v377 = vunpack.c.0.s8 %v376
        %v378 = vlaneseq
        %v379 = vshrl.u32 %v378, 7
        %v380 = vsub.s32 %v377, %v379
        %v381 = vrot.slane %v374, %v380
        %v383 = vadd.f32 %v349, %v381
        %v384 = vlaneseq
        %vm385 = vcmp.ge.s32.totalorder %v384, 0
        %vm386 = vcmp.lt.s32.totalorder %v384, 256
        %vm387 = vmand %vm385, %vm386
        %388 = vst.msk [vmem:[#allocation2] sm:$0x3] %vm387, %v383
        %v389 = vld [vmem:[#allocation3] sm:$0x3]
        %v390 = vadd.f32 %v389, %v272
        %391 = vst.msk [vmem:[#allocation3] sm:$0x3] %vm387, %v390
        // Predicated region
        $region41: #{tpu_custom_call.1} parent=27 // pred_check
          %p392 = pneg %p254
        $region42: #{tpu_custom_call.1} parent=27 // pred_check_branch
          %394 = sbr.rel (%p392) target = $region44
        $region43: #{tpu_custom_call.1} parent=27 // pred_region
          %v395 = vld [vmem:[#allocation2] sm:$0x3]
          %v397 = vlaneseq
          %v398 = vshrl.u32 %v397, 7
          %v399 = vsub.s32 0, %v398
          %v400 = vrot.slane %v395, %v399
          %v401 = vlaneseq
          %v402 = vshrl.u32 %v401, 7
          %v403 = vsub.s32 1, %v402
          %v404 = vrot.slane %v395, %v403
          %vm407 = vcmask 1040384
          %v408 = vsel %vm407, %v400, 0.0
          %v409 = vsel %vm407, %v404, 0.0
          %v410 = vadd.f32 %v408, %v409
          %411 = vadd.xlane.f32.xlu0 %v410
          %v412 = vpop.xlane.xlu0 %411
          %vm413 = vcmask 0
          %414 = vst.msk [vmem:[%s250] sm:$0x1] %vm413, %v412
          %v415 = vld [vmem:[#allocation3] sm:$0x3]
          %v417 = vlaneseq
          %v418 = vshrl.u32 %v417, 7
          %v419 = vsub.s32 0, %v418
          %v420 = vrot.slane %v415, %v419
          %v421 = vlaneseq
          %v422 = vshrl.u32 %v421, 7
          %v423 = vsub.s32 1, %v422
          %v424 = vrot.slane %v415, %v423
          %v427 = vsel %vm407, %v420, 0.0
          %v428 = vsel %vm407, %v424, 0.0
          %v429 = vadd.f32 %v427, %v428
          %430 = vadd.xlane.f32.xlu0 %v429
          %v431 = vpop.xlane.xlu0 %430
          %432 = vst.msk [vmem:[%s253] sm:$0x1] %vm413, %v431
        $region44: #{tpu_custom_call.1} parent=27 // pred_fallthru
          _
        %p433 = scmp.lt.s32.totalorder %s25, 1
        %s434 = scalar_select %p433, %s25, 1
        %s435 = scalar_lea.vmem %s2, %s434
        %p436 = scmp.lt.s32.totalorder %s25, 1
        %s437 = scalar_select %p436, %s25, 1
        %s438 = scalar_lea.vmem %s3, %s437
        // Predicated region
        $region45: #{tpu_custom_call.1} parent=27 // pred_check
          %p439 = pneg %p107
        $region46: #{tpu_custom_call.1} parent=27 // pred_check_branch
          %441 = sbr.rel (%p439) target = $region48
        $region47: #{tpu_custom_call.1} parent=27 // pred_region
          _
        $region48: #{tpu_custom_call.1} parent=27 // pred_fallthru
          _
        // Predicated region
        $region49: #{tpu_custom_call.1} parent=27 // pred_check
          %p442 = pneg %p133
        $region50: #{tpu_custom_call.1} parent=27 // pred_check_branch
          %444 = sbr.rel (%p442) target = $region52
        $region51: #{tpu_custom_call.1} parent=27 // pred_region
          _
        $region52: #{tpu_custom_call.1} parent=27 // pred_fallthru
          _
      $region28: #{tpu_custom_call.1} parent=5 // pred_fallthru
        _
      %p445 = scmp.le.s32.totalorder 2, %s16
      // Predicated region
      $region53: #{tpu_custom_call.1} parent=5 // pred_check
        %p446 = pneg %p445
      $region54: #{tpu_custom_call.1} parent=5 // pred_check_branch
        %448 = sbr.rel (%p446) target = $region56
      $region55: #{tpu_custom_call.1} parent=5 // pred_region
        %s449 = ssub.s32 %s16, 2
        // Predicated region
        $region57: #{tpu_custom_call.1} parent=55 // pred_check
          %p450 = pneg %p113
        $region58: #{tpu_custom_call.1} parent=55 // pred_check_branch
          %452 = sbr.rel (%p450) target = $region60
        $region59: #{tpu_custom_call.1} parent=55 // pred_region
          %p453 = scmp.lt.s32.totalorder %s27, 1
          %s454 = scalar_select %p453, %s27, 1
          %s455 = scalar_lea.vmem %s2, %s454
        $region60: #{tpu_custom_call.1} parent=55 // pred_fallthru
          _
        // Predicated region
        $region61: #{tpu_custom_call.1} parent=55 // pred_check
          %p456 = pneg %p139
        $region62: #{tpu_custom_call.1} parent=55 // pred_check_branch
          %458 = sbr.rel (%p456) target = $region64
        $region63: #{tpu_custom_call.1} parent=55 // pred_region
          %p459 = scmp.lt.s32.totalorder %s27, 1
          %s460 = scalar_select %p459, %s27, 1
          %s461 = scalar_lea.vmem %s3, %s460
        $region64: #{tpu_custom_call.1} parent=55 // pred_fallthru
          _
      $region56: #{tpu_custom_call.1} parent=5 // pred_fallthru
        _
    $region6: #{tpu_custom_call.1} parent=1 // loop_footer
      %s20 = sadd.s32 1, %s16
    $region7: #{tpu_custom_call.1} parent=1 // loop_footer_branch
      %15 = sbr.rel target = $region3
    $region8: #{tpu_custom_call.1} parent=1 // loop_exit
      _
    %462 = vsyncpa [#allocation5], 1
    %s463 = scalar_lea.sflag [#allocation5], 1
    %464 = vsyncpa %s463, 1
    %465 = vsyncpa [#allocation7], 1
    %s466 = scalar_lea.sflag [#allocation7], 1
    %467 = vsyncpa %s466, 1

</llo_original>
